<compile_context>
chip_gen: v7x
topology: tpu7x:2x2x1
jax: 0.10.0
libtpu: 0.0.40
codegen_flags: <defaults>
</compile_context>

<pallas_src>
import jax
import jax.numpy as jnp
from jax.experimental import pallas as pl
from jax.experimental.pallas import tpu as pltpu

VOCAB = 16
HIDDEN = 32
SEQ = 8


# ----------------------------------------------------------------------------
# Kernel: entire token sequence in ONE grid step.
#   Phase 1: gather embedding rows from the resident table into VMEM scratch.
#   Phase 2: batched input-side matmul GI = X @ W_i + b_i  (one MXU pass, M=seq).
#   Phase 3: serial GRU recurrence (fully unrolled; seq is static and tiny),
#            per step only h @ W_h + gate math; outputs accumulate in the
#            resident out block.
# ----------------------------------------------------------------------------
def gru_encoder_kernel(tok_ref,   # SMEM (seq,) int32        — scalar prefetch
                       emb_ref,   # VMEM (VOCAB, 1, H) f32   — resident table
                       h0_ref,    # VMEM (1, H) f32          — initial hidden
                       wi_ref,    # VMEM (H, 3H) f32         — W_ih^T, cols [r|z|n]
                       bi_ref,    # VMEM (1, 3H) f32         — [b_ir+b_hr | b_iz+b_hz | b_in]
                       wh_ref,    # VMEM (H, 3H) f32         — W_hh^T, cols [r|z|n]
                       bh_ref,    # VMEM (1, 3H) f32         — [0 | 0 | b_hn]
                       out_ref,   # VMEM (seq, 1, H) f32     — resident output block
                       x_scr):    # VMEM (seq, H) f32        — gathered embeddings
    seq = tok_ref.shape[0]
    H = h0_ref.shape[-1]

    # ---- Phase 1: in-kernel embedding gather (dynamic leading-axis index) ----
    for t in range(seq):                      # seq is static; static store offsets
        x_scr[t:t + 1, :] = emb_ref[tok_ref[t]]          # (1, H)

    # ---- Phase 2: batched input projection, hoisted off the recurrence ----
    gi_all = jnp.dot(x_scr[...], wi_ref[...],
                     preferred_element_type=jnp.float32) + bi_ref[...]   # (seq, 3H)

    # ---- Phase 3: serial recurrence (fully unrolled at trace time) ----
    h = h0_ref[...]                                       # (1, H)
    for t in range(seq):
        gh = jnp.dot(h, wh_ref[...],
                     preferred_element_type=jnp.float32) + bh_ref[...]   # (1, 3H)
        gi = gi_all[t:t + 1, :]                           # static slice, (1, 3H)
        r = jax.nn.sigmoid(gi[:, 0:H] + gh[:, 0:H])
        z = jax.nn.sigmoid(gi[:, H:2 * H] + gh[:, H:2 * H])
        n = jnp.tanh(gi[:, 2 * H:3 * H] + r * gh[:, 2 * H:3 * H])   # b_hn inside r*(...)
        h = n + z * (h - n)                               # == (1-z)*n + z*h
        out_ref[t] = h                                    # stays in VMEM; one writeback at end


# ----------------------------------------------------------------------------
# One-time parameter preparation (no per-call transposes / reshapes).
# ----------------------------------------------------------------------------
def prepare_params(params, hidden):
    H = hidden
    w_ih, w_hh = params["w_ih"], params["w_hh"]           # (3H, H), rows [r | z | n]
    b_ih, b_hh = params["b_ih"], params["b_hh"]           # (3H,)

    wi = w_ih.T                                           # (H, 3H): x @ wi == x @ W_ih^T
    wh = w_hh.T                                           # (H, 3H): h @ wh == h @ W_hh^T
    bi = jnp.concatenate([b_ih[:2 * H] + b_hh[:2 * H],    # r/z biases pre-merged
                          b_ih[2 * H:]]).reshape(1, 3 * H)
    bh = jnp.concatenate([jnp.zeros((2 * H,), jnp.float32),
                          b_hh[2 * H:]]).reshape(1, 3 * H)  # b_hn stays inside r*(...)
    emb3 = params["embedding"].reshape(-1, 1, H)          # (VOCAB, 1, H)
    return {"emb": emb3, "wi": wi, "bi": bi, "wh": wh, "bh": bh}


# ----------------------------------------------------------------------------
# Wrapper: whole sequence in ONE pallas_call, ONE grid step.
# seq=1 == exact nn.GRU(embedding(tok).view(1,1,-1), h) semantics.
# ----------------------------------------------------------------------------
def encoder_forward(prep, tokens, hidden_state):
    """tokens: (seq,) int32; hidden_state: (1, 1, H) f32.
       Returns (output, h_n): output (seq, 1, H), h_n (1, 1, H) — nn.GRU semantics."""
    seq = tokens.shape[0]
    H = hidden_state.shape[-1]
    vocab = prep["emb"].shape[0]
    h0 = hidden_state.reshape(1, H)

    grid_spec = pltpu.PrefetchScalarGridSpec(
        num_scalar_prefetch=1,          # token ids -> SMEM, readable inside the kernel
        grid=(1,),                      # single grid step; recurrence unrolled in-kernel
        in_specs=[
            pl.BlockSpec((vocab, 1, H), lambda i, tok: (0, 0, 0)),   # resident emb table
            pl.BlockSpec((1, H), lambda i, tok: (0, 0)),             # h0
            pl.BlockSpec((H, 3 * H), lambda i, tok: (0, 0)),         # W_i
            pl.BlockSpec((1, 3 * H), lambda i, tok: (0, 0)),         # b_i
            pl.BlockSpec((H, 3 * H), lambda i, tok: (0, 0)),         # W_h
            pl.BlockSpec((1, 3 * H), lambda i, tok: (0, 0)),         # b_h
        ],
        out_specs=pl.BlockSpec((seq, 1, H), lambda i, tok: (0, 0, 0)),
        scratch_shapes=[pltpu.VMEM((seq, H), jnp.float32)],          # gathered embeddings
    )

    out = pl.pallas_call(
        gru_encoder_kernel,
        out_shape=jax.ShapeDtypeStruct((seq, 1, H), jnp.float32),
        grid_spec=grid_spec,
        compiler_params=pltpu.CompilerParams(
            dimension_semantics=("arbitrary",),
        ),
    )(tokens, prep["emb"], h0, prep["wi"], prep["bi"], prep["wh"], prep["bh"])

    h_n = out[seq - 1].reshape(1, 1, H)   # single-layer GRU: h_n == output[-1]
    return out, h_n


# ----------------------------------------------------------------------------
# Parameter init (PyTorch-like shapes) and pure-JAX references.
# ----------------------------------------------------------------------------
def init_params(key, vocab, hidden):
    k0, k1, k2, k3, k4 = jax.random.split(key, 5)
    bound = 1.0 / jnp.sqrt(hidden)
    return {
        "embedding": jax.random.normal(k0, (vocab, hidden), jnp.float32),
        "w_ih": jax.random.uniform(k1, (3 * hidden, hidden), jnp.float32, -bound, bound),
        "w_hh": jax.random.uniform(k2, (3 * hidden, hidden), jnp.float32, -bound, bound),
        "b_ih": jax.random.uniform(k3, (3 * hidden,), jnp.float32, -bound, bound),
        "b_hh": jax.random.uniform(k4, (3 * hidden,), jnp.float32, -bound, bound),
    }


def gru_step_ref(params, x, h):
    H = h.shape[-1]
    gi = x @ params["w_ih"].T + params["b_ih"]
    gh = h @ params["w_hh"].T + params["b_hh"]
    i_r, i_z, i_n = gi[:, :H], gi[:, H:2 * H], gi[:, 2 * H:]
    h_r, h_z, h_n = gh[:, :H], gh[:, H:2 * H], gh[:, 2 * H:]
    r = jax.nn.sigmoid(i_r + h_r)
    z = jax.nn.sigmoid(i_z + h_z)
    n = jnp.tanh(i_n + r * h_n)
    return (1.0 - z) * n + z * h


def encoder_seq_ref(params, tokens, hidden_state):
    H = hidden_state.shape[-1]

    def step(h, tok):
        x = params["embedding"][tok].reshape(1, H)
        h_new = gru_step_ref(params, x, h)
        return h_new, h_new

    h_last, outs = jax.lax.scan(step, hidden_state.reshape(1, H), tokens)
    return outs, h_last.reshape(1, 1, H)


if __name__ == "__main__":
    key = jax.random.PRNGKey(0)
    pkey, tkey, skey, hkey = jax.random.split(key, 4)

    params = init_params(pkey, VOCAB, HIDDEN)
    prep = prepare_params(params, HIDDEN)            # fused/transposed weights built ONCE
    hidden0 = jax.random.normal(hkey, (1, 1, HIDDEN), jnp.float32)

    # --- Case 1: single token == exact PyTorch Encoder.forward semantics ---
    token = jax.random.randint(tkey, (1,), 0, VOCAB, dtype=jnp.int32)
    out1, hn1 = encoder_forward(prep, token, hidden0)
    out1 = jax.block_until_ready(out1)
    hn1 = jax.block_until_ready(hn1)
    ref_out1, ref_hn1 = encoder_seq_ref(params, token, hidden0)
    assert out1.shape == (1, 1, HIDDEN) and hn1.shape == (1, 1, HIDDEN)
    assert jnp.allclose(out1, ref_out1, atol=1e-5, rtol=1e-5)
    assert jnp.allclose(hn1, ref_hn1, atol=1e-5, rtol=1e-5)

    # --- Case 2: sequence of tokens, whole recurrence inside one grid step ---
    tokens = jax.random.randint(skey, (SEQ,), 0, VOCAB, dtype=jnp.int32)
    out8, hn8 = encoder_forward(prep, tokens, hidden0)
    out8 = jax.block_until_ready(out8)
    hn8 = jax.block_until_ready(hn8)
    ref_out8, ref_hn8 = encoder_seq_ref(params, tokens, hidden0)
    assert out8.shape == (SEQ, 1, HIDDEN) and hn8.shape == (1, 1, HIDDEN)
    assert jnp.allclose(out8, ref_out8, atol=1e-5, rtol=1e-5)
    assert jnp.allclose(hn8, ref_hn8, atol=1e-5, rtol=1e-5)

    print("KERNEL_OK")
</pallas_src>

<mosaic_0001>
module attributes {stable_mosaic.version = 11 : i64} {
  func.func @gru_encoder_kernel(%arg0: i32, %arg1: memref<1xi32, #tpu.memory_space<smem>>, %arg2: memref<16x1x32xf32, #tpu.memory_space<vmem>>, %arg3: memref<1x32xf32, #tpu.memory_space<vmem>>, %arg4: memref<32x96xf32, #tpu.memory_space<vmem>>, %arg5: memref<1x96xf32, #tpu.memory_space<vmem>>, %arg6: memref<32x96xf32, #tpu.memory_space<vmem>>, %arg7: memref<1x96xf32, #tpu.memory_space<vmem>>, %arg8: memref<1x1x32xf32, #tpu.memory_space<vmem>>, %arg9: memref<1x32xf32, #tpu.memory_space<vmem>>) attributes {dimension_semantics = [#tpu.dimension_semantics<arbitrary>], iteration_bounds = array<i64: 1>, scalar_prefetch = 1 : i64, scratch_operands = 1 : i64, tpu.core_type = #tpu.core_type<tc>, window_params = [{pipeline_mode = #tpu.pipeline_mode<synchronous>, transform_indices = @transform_0, window_bounds = array<i64: 16, 1, 32>}, {pipeline_mode = #tpu.pipeline_mode<synchronous>, transform_indices = @transform_1, window_bounds = array<i64: 1, 32>}, {pipeline_mode = #tpu.pipeline_mode<synchronous>, transform_indices = @transform_2, window_bounds = array<i64: 32, 96>}, {pipeline_mode = #tpu.pipeline_mode<synchronous>, transform_indices = @transform_3, window_bounds = array<i64: 1, 96>}, {pipeline_mode = #tpu.pipeline_mode<synchronous>, transform_indices = @transform_4, window_bounds = array<i64: 32, 96>}, {pipeline_mode = #tpu.pipeline_mode<synchronous>, transform_indices = @transform_5, window_bounds = array<i64: 1, 96>}, {pipeline_mode = #tpu.pipeline_mode<synchronous>, transform_indices = @transform_6, window_bounds = array<i64: 1, 1, 32>}]} {
    %c0 = arith.constant 0 : index
    %0 = memref.load %arg1[%c0] : memref<1xi32, #tpu.memory_space<smem>>
    %1 = arith.index_cast %0 : i32 to index
    %c0_0 = arith.constant 0 : index
    %c0_1 = arith.constant 0 : index
    %2 = vector.load %arg2[%1, %c0_0, %c0_1] : memref<16x1x32xf32, #tpu.memory_space<vmem>>, vector<1x1x32xf32>
    %3 = vector.shape_cast %2 : vector<1x1x32xf32> to vector<1x32xf32>
    %c0_2 = arith.constant 0 : index
    %c0_3 = arith.constant 0 : index
    %4 = vector.load %arg9[%c0_2, %c0_3] : memref<1x32xf32, #tpu.memory_space<vmem>>, vector<1x32xf32>
    tpu.vector_store %arg9[%c0_2, %c0_3], %3 {strides = array<i32>} : memref<1x32xf32, #tpu.memory_space<vmem>>, vector<1x32xf32>,
    %c0_4 = arith.constant 0 : index
    %c0_5 = arith.constant 0 : index
    %5 = vector.load %arg9[%c0_4, %c0_5] : memref<1x32xf32, #tpu.memory_space<vmem>>, vector<1x32xf32>
    %c0_6 = arith.constant 0 : index
    %c0_7 = arith.constant 0 : index
    %6 = vector.load %arg4[%c0_6, %c0_7] : memref<32x96xf32, #tpu.memory_space<vmem>>, vector<32x96xf32>
    %cst = arith.constant dense<0.000000e+00> : vector<1x96xf32>
    %7 = tpu.matmul %5, %6, %cst {dimension_numbers = #tpu.dot_dimension_numbers<[1], [0], [0], [1], [0, 0, 1, 1], [], []>} : vector<1x32xf32>, vector<32x96xf32>, vector<1x96xf32> -> vector<1x96xf32>
    %c0_8 = arith.constant 0 : index
    %c0_9 = arith.constant 0 : index
    %8 = vector.load %arg5[%c0_8, %c0_9] : memref<1x96xf32, #tpu.memory_space<vmem>>, vector<1x96xf32>
    %9 = arith.addf %7, %8 : vector<1x96xf32>
    %c0_10 = arith.constant 0 : index
    %c0_11 = arith.constant 0 : index
    %10 = vector.load %arg3[%c0_10, %c0_11] : memref<1x32xf32, #tpu.memory_space<vmem>>, vector<1x32xf32>
    %c0_12 = arith.constant 0 : index
    %c0_13 = arith.constant 0 : index
    %11 = vector.load %arg6[%c0_12, %c0_13] : memref<32x96xf32, #tpu.memory_space<vmem>>, vector<32x96xf32>
    %cst_14 = arith.constant dense<0.000000e+00> : vector<1x96xf32>
    %12 = tpu.matmul %10, %11, %cst_14 {dimension_numbers = #tpu.dot_dimension_numbers<[1], [0], [0], [1], [0, 0, 1, 1], [], []>} : vector<1x32xf32>, vector<32x96xf32>, vector<1x96xf32> -> vector<1x96xf32>
    %c0_15 = arith.constant 0 : index
    %c0_16 = arith.constant 0 : index
    %13 = vector.load %arg7[%c0_15, %c0_16] : memref<1x96xf32, #tpu.memory_space<vmem>>, vector<1x96xf32>
    %14 = arith.addf %12, %13 : vector<1x96xf32>
    %15 = vector.extract_strided_slice %9 {offsets = [0, 0], sizes = [1, 32], strides = [1, 1]} : vector<1x96xf32> to vector<1x32xf32>
    %16 = vector.extract_strided_slice %14 {offsets = [0, 0], sizes = [1, 32], strides = [1, 1]} : vector<1x96xf32> to vector<1x32xf32>
    %17 = arith.addf %15, %16 : vector<1x32xf32>
    %18 = arith.negf %17 : vector<1x32xf32>
    %19 = math.exp %18 : vector<1x32xf32>
    %cst_17 = arith.constant 1.000000e+00 : f32
    %20 = vector.broadcast %cst_17 : f32 to vector<1x32xf32>
    %21 = arith.addf %20, %19 : vector<1x32xf32>
    %22 = arith.divf %20, %21 : vector<1x32xf32>
    %23 = vector.extract_strided_slice %9 {offsets = [0, 32], sizes = [1, 32], strides = [1, 1]} : vector<1x96xf32> to vector<1x32xf32>
    %24 = vector.extract_strided_slice %14 {offsets = [0, 32], sizes = [1, 32], strides = [1, 1]} : vector<1x96xf32> to vector<1x32xf32>
    %25 = arith.addf %23, %24 : vector<1x32xf32>
    %26 = arith.negf %25 : vector<1x32xf32>
    %27 = math.exp %26 : vector<1x32xf32>
    %cst_18 = arith.constant 1.000000e+00 : f32
    %28 = vector.broadcast %cst_18 : f32 to vector<1x32xf32>
    %29 = arith.addf %28, %27 : vector<1x32xf32>
    %30 = arith.divf %28, %29 : vector<1x32xf32>
    %31 = vector.extract_strided_slice %9 {offsets = [0, 64], sizes = [1, 32], strides = [1, 1]} : vector<1x96xf32> to vector<1x32xf32>
    %32 = vector.extract_strided_slice %14 {offsets = [0, 64], sizes = [1, 32], strides = [1, 1]} : vector<1x96xf32> to vector<1x32xf32>
    %33 = arith.mulf %22, %32 : vector<1x32xf32>
    %34 = arith.addf %31, %33 : vector<1x32xf32>
    %35 = math.tanh %34 : vector<1x32xf32>
    %36 = arith.subf %10, %35 : vector<1x32xf32>
    %37 = arith.mulf %30, %36 : vector<1x32xf32>
    %38 = arith.addf %35, %37 : vector<1x32xf32>
    %c0_19 = arith.constant 0 : index
    %c0_20 = arith.constant 0 : index
    %c0_21 = arith.constant 0 : index
    %39 = vector.load %arg8[%c0_19, %c0_20, %c0_21] : memref<1x1x32xf32, #tpu.memory_space<vmem>>, vector<1x1x32xf32>
    %40 = vector.shape_cast %39 : vector<1x1x32xf32> to vector<1x32xf32>
    %41 = vector.shape_cast %38 : vector<1x32xf32> to vector<1x1x32xf32>
    tpu.vector_store %arg8[%c0_19, %c0_20, %c0_21], %41 {strides = array<i32>} : memref<1x1x32xf32, #tpu.memory_space<vmem>>, vector<1x1x32xf32>,
    return
  }
  func.func @transform_0(%arg0: i32, %arg1: memref<1xi32, #tpu.memory_space<smem>>) -> (i32, i32, i32) {
    %c0_i32 = arith.constant 0 : i32
    %c0_i32_0 = arith.constant 0 : i32
    %c0_i32_1 = arith.constant 0 : i32
    %c0_i32_2 = arith.constant 0 : i32
    return %c0_i32, %c0_i32_0, %c0_i32_1 : i32, i32, i32
  }
  func.func @transform_1(%arg0: i32, %arg1: memref<1xi32, #tpu.memory_space<smem>>) -> (i32, i32) {
    %c0_i32 = arith.constant 0 : i32
    %c0_i32_0 = arith.constant 0 : i32
    %c0_i32_1 = arith.constant 0 : i32
    return %c0_i32, %c0_i32_0 : i32, i32
  }
  func.func @transform_2(%arg0: i32, %arg1: memref<1xi32, #tpu.memory_space<smem>>) -> (i32, i32) {
    %c0_i32 = arith.constant 0 : i32
    %c0_i32_0 = arith.constant 0 : i32
    %c0_i32_1 = arith.constant 0 : i32
    return %c0_i32, %c0_i32_0 : i32, i32
  }
  func.func @transform_3(%arg0: i32, %arg1: memref<1xi32, #tpu.memory_space<smem>>) -> (i32, i32) {
    %c0_i32 = arith.constant 0 : i32
    %c0_i32_0 = arith.constant 0 : i32
    %c0_i32_1 = arith.constant 0 : i32
    return %c0_i32, %c0_i32_0 : i32, i32
  }
  func.func @transform_4(%arg0: i32, %arg1: memref<1xi32, #tpu.memory_space<smem>>) -> (i32, i32) {
    %c0_i32 = arith.constant 0 : i32
    %c0_i32_0 = arith.constant 0 : i32
    %c0_i32_1 = arith.constant 0 : i32
    return %c0_i32, %c0_i32_0 : i32, i32
  }
  func.func @transform_5(%arg0: i32, %arg1: memref<1xi32, #tpu.memory_space<smem>>) -> (i32, i32) {
    %c0_i32 = arith.constant 0 : i32
    %c0_i32_0 = arith.constant 0 : i32
    %c0_i32_1 = arith.constant 0 : i32
    return %c0_i32, %c0_i32_0 : i32, i32
  }
  func.func @transform_6(%arg0: i32, %arg1: memref<1xi32, #tpu.memory_space<smem>>) -> (i32, i32, i32) {
    %c0_i32 = arith.constant 0 : i32
    %c0_i32_0 = arith.constant 0 : i32
    %c0_i32_1 = arith.constant 0 : i32
    %c0_i32_2 = arith.constant 0 : i32
    return %c0_i32, %c0_i32_0, %c0_i32_1 : i32, i32, i32
  }
}

</mosaic_0001>

<llo_original>
// kernel: tpu_custom_call.1
$region0: #{tpu_custom_call.1}
  #allocation0 [shape = 'u32[]', space=smem, size = 0x4, offset = 0x4, fixed_abs, tag = 'smem constant byte address 0x4 - core index']
  #allocation1 [shape = 'u32[144,128]{1,0:T(1,128)}', space=vmem, size = 0x12000, scoped, tag = 'internal scratch']
  #allocation2 [shape = 'f32[1,32]{1,0:T(1,128)}', space=vmem, size = 0x200, scoped, tag = 'scratch operand']
  #allocation3 [shape = 's32[1]{0}', space=sflag, size = 0x4, scoped, tag = 'scoped memory for tpu_custom_call.1']
  #allocation4 [shape = 's32[1]{0:T(128)S(6)}', space=smem, size = 0x200, scoped, tag = 'prefetched SMEM operand 0']
  %s0 = inlined_call_operand.<no memory space> [shape: s32[1], index: 0, kind: input, shape index: {}]
  %s1 = inlined_call_operand.hbm [shape: f32[16,1,32], index: 1, kind: input, shape index: {}]
  %s2 = inlined_call_operand.vmem [shape: f32[1,32], index: 2, kind: input, shape index: {}]
  %s3 = inlined_call_operand.hbm [shape: f32[32,96], index: 3, kind: input, shape index: {}]
  %s4 = inlined_call_operand.vmem [shape: f32[1,96], index: 4, kind: input, shape index: {}]
  %s5 = inlined_call_operand.hbm [shape: f32[32,96], index: 5, kind: input, shape index: {}]
  %s6 = inlined_call_operand.vmem [shape: f32[1,96], index: 6, kind: input, shape index: {}]
  %s7 = inlined_call_operand.hbm [shape: f32[1,1,32], index: 7, kind: output, shape index: {}]
  %s8 = sld [smem:[#allocation0]]
  $region46: #{tpu_custom_call.1} parent=0
    _
  %s10 = ssub.s32 1, %s8
  %s11 = scalar_select 0, %s10, %s8
  %12 = sst [smem:[#allocation4]] %s0
  $region1: #{tpu_custom_call.1} parent=0
    #allocation5 [shape = 'u8[8192]{0}', space=vmem, size = 0x2000, scoped, tag = 'input window, operand 1, single buffered']
    #allocation6 [shape = 's32[1]{0}', space=sflag, size = 0x4, scoped, tag = 'scoped memory for tpu_custom_call.1']
    #allocation7 [shape = 's32[1]{0}', space=sflag, size = 0x4, scoped, tag = 'scoped memory for tpu_custom_call.1']
    #allocation8 [shape = 'u8[16384]{0}', space=vmem, size = 0x4000, scoped, tag = 'input window, operand 3, single buffered']
    #allocation9 [shape = 's32[1]{0}', space=sflag, size = 0x4, scoped, tag = 'scoped memory for tpu_custom_call.1']
    #allocation10 [shape = 'u8[16384]{0}', space=vmem, size = 0x4000, scoped, tag = 'input window, operand 5, single buffered']
    #allocation11 [shape = 'u8[512]{0}', space=vmem, size = 0x400, scoped, tag = 'output window, operand 0, single buffered']
    %13 = vsyncpa [#allocation6], 0
    %14 = vsyncpa [#allocation9], 0
    %15 = vsyncpa [#allocation7], 0
    // Predicated region
    $region2: #{tpu_custom_call.1} parent=1 // pred_check
      _
    $region3: #{tpu_custom_call.1} parent=1 // pred_check_branch
      %17 = sbr.rel (0) target = $region5
    $region4: #{tpu_custom_call.1} parent=1 // pred_region
      %s19 = ssub.s32 256, 256
      %20 = vsyncadd [#allocation6], %s19
      %s21 = sshll.u32 [#allocation5], 4
      %s22 = int_to_ptr.vmem [resolvable:$true] %s21
      %27 = dma.hbm_to_vmem [thread:$0]  %s1, 256, %s22, [#allocation6], 16, 16, 1
    $region5: #{tpu_custom_call.1} parent=1 // pred_fallthru
      _
    // Predicated region
    $region6: #{tpu_custom_call.1} parent=1 // pred_check
      _
    $region7: #{tpu_custom_call.1} parent=1 // pred_check_branch
      %29 = sbr.rel (0) target = $region9
    $region8: #{tpu_custom_call.1} parent=1 // pred_region
      _
    $region9: #{tpu_custom_call.1} parent=1 // pred_fallthru
      _
    // Predicated region
    $region10: #{tpu_custom_call.1} parent=1 // pred_check
      _
    $region11: #{tpu_custom_call.1} parent=1 // pred_check_branch
      %31 = sbr.rel (0) target = $region13
    $region12: #{tpu_custom_call.1} parent=1 // pred_region
      %s33 = ssub.s32 512, 512
      %34 = vsyncadd [#allocation9], %s33
      %s35 = sshll.u32 [#allocation8], 4
      %s36 = int_to_ptr.vmem [resolvable:$true] %s35
      %41 = dma.hbm_to_vmem [thread:$0]  %s3, 512, %s36, [#allocation9], 128, 128, 8
    $region13: #{tpu_custom_call.1} parent=1 // pred_fallthru
      _
    // Predicated region
    $region14: #{tpu_custom_call.1} parent=1 // pred_check
      _
    $region15: #{tpu_custom_call.1} parent=1 // pred_check_branch
      %43 = sbr.rel (0) target = $region17
    $region16: #{tpu_custom_call.1} parent=1 // pred_region
      _
    $region17: #{tpu_custom_call.1} parent=1 // pred_fallthru
      _
    // Predicated region
    $region18: #{tpu_custom_call.1} parent=1 // pred_check
      _
    $region19: #{tpu_custom_call.1} parent=1 // pred_check_branch
      %45 = sbr.rel (0) target = $region21
    $region20: #{tpu_custom_call.1} parent=1 // pred_region
      %s47 = ssub.s32 512, 512
      %48 = vsyncadd [#allocation9], %s47
      %s49 = sshll.u32 [#allocation10], 4
      %s50 = int_to_ptr.vmem [resolvable:$true] %s49
      %55 = dma.hbm_to_vmem [thread:$0]  %s5, 512, %s50, [#allocation9], 128, 128, 8
    $region21: #{tpu_custom_call.1} parent=1 // pred_fallthru
      _
    // Predicated region
    $region22: #{tpu_custom_call.1} parent=1 // pred_check
      _
    $region23: #{tpu_custom_call.1} parent=1 // pred_check_branch
      %57 = sbr.rel (0) target = $region25
    $region24: #{tpu_custom_call.1} parent=1 // pred_region
      _
    $region25: #{tpu_custom_call.1} parent=1 // pred_fallthru
      _
    // Predicated region
    $region26: #{tpu_custom_call.1} parent=1 // pred_check
      _
    $region27: #{tpu_custom_call.1} parent=1 // pred_check_branch
      %59 = sbr.rel (0) target = $region29
    $region28: #{tpu_custom_call.1} parent=1 // pred_region
      %60 = dma.done [#allocation6], 256
    $region29: #{tpu_custom_call.1} parent=1 // pred_fallthru
      _
    // Predicated region
    $region30: #{tpu_custom_call.1} parent=1 // pred_check
      _
    $region31: #{tpu_custom_call.1} parent=1 // pred_check_branch
      %62 = sbr.rel (0) target = $region33
    $region32: #{tpu_custom_call.1} parent=1 // pred_region
      %63 = dma.done [#allocation9], 512
    $region33: #{tpu_custom_call.1} parent=1 // pred_fallthru
      _
    // Predicated region
    $region34: #{tpu_custom_call.1} parent=1 // pred_check
      _
    $region35: #{tpu_custom_call.1} parent=1 // pred_check_branch
      %65 = sbr.rel (0) target = $region37
    $region36: #{tpu_custom_call.1} parent=1 // pred_region
      %66 = dma.done [#allocation9], 512
    $region37: #{tpu_custom_call.1} parent=1 // pred_fallthru
      _
    %s67 = sld [smem:[#allocation4]]
    %s68 = scalar_lea.vmem [#allocation5], %s67
    %v69 = vld [vmem:[%s68] sm:$0x1]
    %vm70 = vcmask 253952
    %71 = vst.msk [vmem:[#allocation2] sm:$0x1] %vm70, %v69
    %v72 = vld [vmem:[#allocation2] sm:$0x1]
    %v73 = vld [vmem:[#allocation8] sm:$0xff]
    %v74 = vld [vmem:[#allocation8 + $0x8] sm:$0xff]
    %v75 = vld [vmem:[#allocation8 + $0x10] sm:$0xff]
    %v76 = vld [vmem:[#allocation8 + $0x18] sm:$0xff]
    %v77 = vld [vmem:[%s4] sm:$0x1]
    %vm78 = vcmask 261120
    %v80 = vsel %vm78, %v72, 0
    %82 = vmatprep.subr.mxu0 0.0
    %83 = vmatpush1.msra.mxu0 %v73
    %84 = vmatprep.subr.mxu0 0.0
    %85 = vmatpush1.msra.mxu0 %v74
    %86 = vmatprep.subr.mxu0 0.0
    %87 = vmatpush1.msra.mxu0 %v75
    %88 = vmatprep.subr.mxu0 0.0
    %89 = vmatpush1.msra.mxu0 %v76
    %90 = vmatprep.subr.mxu0 0.0
    %91 = vmatpush1.msra.mxu0 0.0
    %92 = vmatprep.subr.mxu0 0.0
    %93 = vmatpush1.msra.mxu0 0.0
    %94 = vmatprep.subr.mxu0 0.0
    %95 = vmatpush1.msra.mxu0 0.0
    %96 = vmatprep.subr.mxu0 0.0
    %97 = vmatpush1.msra.mxu0 0.0
    %98 = vmatprep.subr.mxu0 0.0
    %99 = vmatpush1.msra.mxu0 0.0
    %100 = vmatprep.subr.mxu0 0.0
    %101 = vmatpush1.msra.mxu0 0.0
    %102 = vmatprep.subr.mxu0 0.0
    %103 = vmatpush1.msra.mxu0 0.0
    %104 = vmatprep.subr.mxu0 0.0
    %105 = vmatpush1.msra.mxu0 0.0
    %106 = vmatprep.subr.mxu0 0.0
    %107 = vmatpush1.msra.mxu0 0.0
    %108 = vmatprep.subr.mxu0 0.0
    %109 = vmatpush1.msra.mxu0 0.0
    %110 = vmatprep.subr.mxu0 0.0
    %111 = vmatpush1.msra.mxu0 0.0
    %112 = vmatprep.subr.mxu0 0.0
    %113 = vmatpush1.msra.mxu0 0.0
    %114 = vmatprep.subr.mxu0 0.0
    %115 = vmatpush1.msra.mxu0 0.0
    %116 = vmatprep.subr.mxu0 0.0
    %117 = vmatpush1.msra.mxu0 0.0
    %118 = vmatprep.subr.mxu0 0.0
    %119 = vmatpush1.msra.mxu0 0.0
    %120 = vmatprep.subr.mxu0 0.0
    %121 = vmatpush1.msra.mxu0 0.0
    %122 = vmatprep.subr.mxu0 0.0
    %123 = vmatpush1.msra.mxu0 0.0
    %124 = vmatprep.subr.mxu0 0.0
    %125 = vmatpush1.msra.mxu0 0.0
    %126 = vmatprep.subr.mxu0 0.0
    %127 = vmatpush1.msra.mxu0 0.0
    %128 = vmatprep.subr.mxu0 0.0
    %129 = vmatpush1.msra.mxu0 0.0
    %130 = vmatprep.subr.mxu0 0.0
    %131 = vmatpush1.msra.mxu0 0.0
    %132 = vmatprep.subr.mxu0 0.0
    %133 = vmatpush1.msra.mxu0 0.0
    %134 = vmatprep.subr.mxu0 0.0
    %135 = vmatpush1.msra.mxu0 0.0
    %136 = vmatprep.subr.mxu0 0.0
    %137 = vmatpush1.msra.mxu0 0.0
    %138 = vmatprep.subr.mxu0 0.0
    %139 = vmatpush1.msra.mxu0 0.0
    %140 = vmatprep.subr.mxu0 0.0
    %141 = vmatpush1.msra.mxu0 0.0
    %142 = vmatprep.subr.mxu0 0.0
    %143 = vmatpush1.msra.mxu0 0.0
    %144 = vmatprep.subr.mxu0 0.0
    %145 = vmatpush1.msra.mxu0 0.0
    %146 = vmatprep.mubr.f32.mxu0 0.0
    %147 = vmatmul.mubr.f32.gmra.mrb[0].mxu0 %v80
    %v148 = vpop.f32.mrb[0].mxu0
    %v149 = vadd.f32 %v77, %v148
    %v150 = vpop.f32.mrb[0].mxu0
    %151 = vdwg.mxu0
    %v152 = vld [vmem:[%s2] sm:$0x1]
    %v153 = vld [vmem:[#allocation10] sm:$0xff]
    %v154 = vld [vmem:[#allocation10 + $0x8] sm:$0xff]
    %v155 = vld [vmem:[#allocation10 + $0x10] sm:$0xff]
    %v156 = vld [vmem:[#allocation10 + $0x18] sm:$0xff]
    %v157 = vld [vmem:[%s6] sm:$0x1]
    %v159 = vsel %vm78, %v152, 0
    %161 = vmatprep.subr.mxu0 0.0
    %162 = vmatpush1.msra.mxu0 %v153
    %163 = vmatprep.subr.mxu0 0.0
    %164 = vmatpush1.msra.mxu0 %v154
    %165 = vmatprep.subr.mxu0 0.0
    %166 = vmatpush1.msra.mxu0 %v155
    %167 = vmatprep.subr.mxu0 0.0
    %168 = vmatpush1.msra.mxu0 %v156
    %169 = vmatprep.subr.mxu0 0.0
    %170 = vmatpush1.msra.mxu0 0.0
    %171 = vmatprep.subr.mxu0 0.0
    %172 = vmatpush1.msra.mxu0 0.0
    %173 = vmatprep.subr.mxu0 0.0
    %174 = vmatpush1.msra.mxu0 0.0
    %175 = vmatprep.subr.mxu0 0.0
    %176 = vmatpush1.msra.mxu0 0.0
    %177 = vmatprep.subr.mxu0 0.0
    %178 = vmatpush1.msra.mxu0 0.0
    %179 = vmatprep.subr.mxu0 0.0
    %180 = vmatpush1.msra.mxu0 0.0
    %181 = vmatprep.subr.mxu0 0.0
    %182 = vmatpush1.msra.mxu0 0.0
    %183 = vmatprep.subr.mxu0 0.0
    %184 = vmatpush1.msra.mxu0 0.0
    %185 = vmatprep.subr.mxu0 0.0
    %186 = vmatpush1.msra.mxu0 0.0
    %187 = vmatprep.subr.mxu0 0.0
    %188 = vmatpush1.msra.mxu0 0.0
    %189 = vmatprep.subr.mxu0 0.0
    %190 = vmatpush1.msra.mxu0 0.0
    %191 = vmatprep.subr.mxu0 0.0
    %192 = vmatpush1.msra.mxu0 0.0
    %193 = vmatprep.subr.mxu0 0.0
    %194 = vmatpush1.msra.mxu0 0.0
    %195 = vmatprep.subr.mxu0 0.0
    %196 = vmatpush1.msra.mxu0 0.0
    %197 = vmatprep.subr.mxu0 0.0
    %198 = vmatpush1.msra.mxu0 0.0
    %199 = vmatprep.subr.mxu0 0.0
    %200 = vmatpush1.msra.mxu0 0.0
    %201 = vmatprep.subr.mxu0 0.0
    %202 = vmatpush1.msra.mxu0 0.0
    %203 = vmatprep.subr.mxu0 0.0
    %204 = vmatpush1.msra.mxu0 0.0
    %205 = vmatprep.subr.mxu0 0.0
    %206 = vmatpush1.msra.mxu0 0.0
    %207 = vmatprep.subr.mxu0 0.0
    %208 = vmatpush1.msra.mxu0 0.0
    %209 = vmatprep.subr.mxu0 0.0
    %210 = vmatpush1.msra.mxu0 0.0
    %211 = vmatprep.subr.mxu0 0.0
    %212 = vmatpush1.msra.mxu0 0.0
    %213 = vmatprep.subr.mxu0 0.0
    %214 = vmatpush1.msra.mxu0 0.0
    %215 = vmatprep.subr.mxu0 0.0
    %216 = vmatpush1.msra.mxu0 0.0
    %217 = vmatprep.subr.mxu0 0.0
    %218 = vmatpush1.msra.mxu0 0.0
    %219 = vmatprep.subr.mxu0 0.0
    %220 = vmatpush1.msra.mxu0 0.0
    %221 = vmatprep.subr.mxu0 0.0
    %222 = vmatpush1.msra.mxu0 0.0
    %223 = vmatprep.subr.mxu0 0.0
    %224 = vmatpush1.msra.mxu0 0.0
    %225 = vmatprep.mubr.f32.mxu0 0.0
    %226 = vmatmul.mubr.f32.gmra.mrb[0].mxu0 %v159
    %v227 = vpop.f32.mrb[0].mxu0
    %v228 = vadd.f32 %v157, %v227
    %v229 = vpop.f32.mrb[0].mxu0
    %230 = vdwg.mxu0
    %v231 = vadd.f32 %v149, %v228
    %v232 = vxor.u32 %v231, 2147483648
    %v233 = vmul.f32 %v232, 1.442695
    %v234 = vpow.pop %v233
    %v235 = vadd.f32 %v234, 1.0
    %v236 = vrcp.pop %v235
    %v237 = vmul.f32 1.0, %v236
    %239 = vrot.lane.b32.xlu0 %v228, 64
    %v240 = vpop.permute.xlu0 %239
    %v242 = vmul.f32 %v237, %v240
    %244 = vrot.lane.b32.xlu0 %v242, 64
    %v245 = vpop.permute.xlu0 %244
    %v247 = vadd.f32 %v149, %v245
    %v248 = vtanh.pop %v247
    %v251 = vunpack.c.l.s4 1966171168
    %v252 = vunpack.c.0.s8 %v251
    %v253 = vlaneseq
    %v254 = vshrl.u32 %v253, 7
    %v255 = vsub.s32 %v252, %v254
    %v256 = vrot.slane %v248, %v255
    %v258 = vunpack.c.l.s4 1966171168
    %v259 = vunpack.c.0.s8 %v258
    %v260 = vlaneseq
    %v261 = vshrl.u32 %v260, 7
    %v262 = vsub.s32 %v259, %v261
    %v263 = vrot.slane %v256, %v262
    %264 = vrot.lane.b32.xlu0 %v263, 64
    %v265 = vpop.permute.xlu0 %264
    %v267 = vsub.f32 %v152, %v265
    %v269 = vlaneseq
    %v270 = vshrl.u32 %v269, 7
    %v271 = vsub.s32 0, %v270
    %v272 = vrot.slane %v267, %v271
    %273 = vrot.lane.b32.xlu0 %v272, 32
    %v274 = vpop.permute.xlu0 %273
    %v276 = vmul.f32 %v237, %v274
    %278 = vrot.lane.b32.xlu0 %v276, 32
    %v279 = vpop.permute.xlu0 %278
    %v281 = vadd.f32 %v248, %v279
    %283 = vrot.lane.b32.xlu0 %v281, 64
    %v284 = vpop.permute.xlu0 %283
    %286 = vst.msk [vmem:[#allocation11] sm:$0x1] %vm70, %v284
    // Predicated region
    $region38: #{tpu_custom_call.1} parent=1 // pred_check
      _
    $region39: #{tpu_custom_call.1} parent=1 // pred_check_branch
      %288 = sbr.rel (0) target = $region41
    $region40: #{tpu_custom_call.1} parent=1 // pred_region
      %s290 = ssub.s32 16, 16
      %291 = vsyncadd [#allocation7], %s290
      %s293 = sshll.u32 [#allocation11], 4
      %s294 = int_to_ptr.vmem [resolvable:$true] %s293
      %296 = dma.vmem_to_hbm [thread:$0]  %s294, 16, %s7, [#allocation7]
    $region41: #{tpu_custom_call.1} parent=1 // pred_fallthru
      _
    // Predicated region
    $region42: #{tpu_custom_call.1} parent=1 // pred_check
      _
    $region43: #{tpu_custom_call.1} parent=1 // pred_check_branch
      %298 = sbr.rel (0) target = $region45
    $region44: #{tpu_custom_call.1} parent=1 // pred_region
      %299 = dma.done [#allocation7], 16
    $region45: #{tpu_custom_call.1} parent=1 // pred_fallthru
      _
    %300 = vsyncpa [#allocation6], 1
    %301 = vsyncpa [#allocation9], 1
    %302 = vsyncpa [#allocation7], 1

</llo_original>
